<compile_context>
chip_gen: v7x
topology: tpu7x:2x2x1
jax: 0.10.0
libtpu: 0.0.40
codegen_flags: <defaults>
</compile_context>

<pallas_src>
import functools

import jax
import jax.numpy as jnp
from jax.experimental import pallas as pl
from jax.experimental.pallas import tpu as pltpu

_TARGET_BLOCK_BYTES = 4 * 1024 * 1024    # per-block target; ~16 MiB live with
                                         # double-buffered in + out blocks
_VMEM_LIMIT_BYTES = 48 * 1024 * 1024     # explicit scoped limit; < v7x 64 MiB


def _round_up(x, m):
    return (x + m - 1) // m * m


def _largest_divisor_at_most(n, cap):
    cap = max(1, min(n, cap))
    for d in range(cap, 0, -1):
        if n % d == 0:
            return d
    return 1


def _shuffle_copy_kernel(x_ref, o_ref):
    # x_ref block: (BN, 1, cp, hw)  from x viewed as (n, groups, cp, hw)
    # o_ref block: (BN, cp, hw)     slab of out viewed as (n, cp, groups*hw),
    #                               placed at a 128-aligned lane offset gi*hw.
    # Permutation is done by the index maps; body is one lane-dense copy.
    o_ref[...] = x_ref[:, 0, :, :]


def _shuffle_sublane_kernel(x_ref, o_ref, *, groups):
    # x_ref block: (BN, groups, cp_blk, hw)  from x viewed as (n, groups, cp, hw)
    # o_ref block: (BN, cp_blk, groups, hw)  from out viewed as (n, cp, groups, hw)
    # Stores start at lane 0 and cover full hw rows; only the static sublane
    # index gi varies -> no cross-lane rotation, no lane-masked stores.
    for gi in range(groups):  # groups is small & static
        o_ref[:, :, gi, :] = x_ref[:, gi, :, :]


def channel_shuffle(x, groups):
    n, c, h, w = x.shape
    assert c % groups == 0, "channels must be divisible by groups"
    if groups == 1:
        return x  # identity
    cp = c // groups
    hw = h * w
    itemsize = jnp.dtype(x.dtype).itemsize
    sub = max(8, 32 // itemsize)              # sublane packing multiple
    x4 = x.reshape(n, groups, cp, hw)         # contiguous (free) view

    compiler_params = pltpu.CompilerParams(
        dimension_semantics=("parallel", "parallel"),
        vmem_limit_bytes=_VMEM_LIMIT_BYTES,
    )

    if hw % 128 == 0:
        # Fast path: lane-dense (BN, cp, hw) blocks; output lane offset gi*hw
        # is a multiple of 128 -> unmasked full-width stores.
        per_batch_bytes = _round_up(cp, sub) * hw * itemsize
        bn_cap = max(1, _TARGET_BLOCK_BYTES // per_batch_bytes)
        bn = _largest_divisor_at_most(n, bn_cap)
        out_flat = pl.pallas_call(
            _shuffle_copy_kernel,
            out_shape=jax.ShapeDtypeStruct((n, cp, groups * hw), x.dtype),
            grid_spec=pl.GridSpec(
                grid=(n // bn, groups),        # groups >= 2 parallel steps
                in_specs=[
                    pl.BlockSpec((bn, 1, cp, hw), lambda i, gi: (i, gi, 0, 0)),
                ],
                out_specs=pl.BlockSpec((bn, cp, hw), lambda i, gi: (i, 0, gi)),
            ),
            compiler_params=compiler_params,
        )(x4)
        # (n, cp, groups*hw) -> (n, c, h, w): channel k = ci*groups + gi holds
        # input channel gi*cp + ci == PyTorch reshape/transpose/reshape.
        return out_flat.reshape(n, c, h, w)

    # General-hw path: 4-D output view (n, cp, groups, hw); the out block is
    # full on its last two dims -> always a legal BlockSpec, lane-aligned stores.
    csplit = 2 if (n == 1 and cp % 16 == 0) else 1   # >= 2 steps when n == 1
    cp_blk = cp // csplit
    hw_pad = _round_up(hw, 128)
    in_pb = groups * _round_up(cp_blk, sub) * hw_pad * itemsize
    out_pb = cp_blk * _round_up(groups, sub) * hw_pad * itemsize
    bn_cap = max(1, _TARGET_BLOCK_BYTES // max(in_pb, out_pb))
    if n >= 2:
        bn_cap = min(bn_cap, n // 2)                 # >= 2 batch steps for v7x
    bn = _largest_divisor_at_most(n, bn_cap)

    kern = functools.partial(_shuffle_sublane_kernel, groups=groups)
    out4 = pl.pallas_call(
        kern,
        out_shape=jax.ShapeDtypeStruct((n, cp, groups, hw), x.dtype),
        grid_spec=pl.GridSpec(
            grid=(n // bn, csplit),
            in_specs=[
                pl.BlockSpec((bn, groups, cp_blk, hw),
                             lambda i, j: (i, 0, j, 0)),
            ],
            out_specs=pl.BlockSpec((bn, cp_blk, groups, hw),
                                   lambda i, j: (i, j, 0, 0)),
        ),
        compiler_params=compiler_params,
    )(x4)
    # (n, cp, groups, hw) -> (n, c, h, w): channel k = ci*groups + gi holds
    # input channel gi*cp + ci, exactly the PyTorch permutation.
    return out4.reshape(n, c, h, w)


def reference_channel_shuffle(x, groups):
    """Pure-JAX port of the PyTorch module's forward."""
    n, c, h, w = x.shape
    y = x.reshape(n, groups, c // groups, h, w)
    y = jnp.swapaxes(y, 1, 2)
    return y.reshape(n, c, h, w)


if __name__ == "__main__":
    key = jax.random.PRNGKey(0)

    # 1) Primary config: batch=2, channels=4, 16x16, groups=2 (hw=256 -> fast path).
    x = jax.random.normal(key, (2, 4, 16, 16), dtype=jnp.float32)
    out = jax.block_until_ready(channel_shuffle(x, 2))
    assert out.shape == (2, 4, 16, 16)
    assert jnp.array_equal(out, reference_channel_shuffle(x, 2)), "fast path g=2"

    # 2) Different channel/group split on the fast path.
    x2 = jax.random.normal(jax.random.PRNGKey(1), (2, 8, 16, 16), dtype=jnp.float32)
    out2 = jax.block_until_ready(channel_shuffle(x2, 4))
    assert jnp.array_equal(out2, reference_channel_shuffle(x2, 4)), "fast path g=4"

    # 3) General-hw path (hw=196, not a multiple of 128) — typical CNN spatial size.
    x3 = jax.random.normal(jax.random.PRNGKey(2), (2, 4, 14, 14), dtype=jnp.float32)
    out3 = jax.block_until_ready(channel_shuffle(x3, 2))
    assert jnp.array_equal(out3, reference_channel_shuffle(x3, 2)), "general path g=2"

    # 4) General-hw path with n == 1 (exercises the channel-split parallel axis).
    x4_ = jax.random.normal(jax.random.PRNGKey(3), (1, 32, 14, 14), dtype=jnp.float32)
    out4 = jax.block_until_ready(channel_shuffle(x4_, 2))
    assert jnp.array_equal(out4, reference_channel_shuffle(x4_, 2)), "general path n=1"

    print("KERNEL_OK")
</pallas_src>

<mosaic_0001>
module attributes {stable_mosaic.version = 11 : i64} {
  func.func @_shuffle_copy_kernel(%arg0: i32, %arg1: i32, %arg2: memref<2x1x2x256xf32, #tpu.memory_space<vmem>>, %arg3: memref<2x2x256xf32, #tpu.memory_space<vmem>>) attributes {dimension_semantics = [#tpu.dimension_semantics<parallel>, #tpu.dimension_semantics<parallel>], iteration_bounds = array<i64: 1, 2>, scalar_prefetch = 0 : i64, scratch_operands = 0 : i64, tpu.core_type = #tpu.core_type<tc>, window_params = [{transform_indices = @transform_0, window_bounds = array<i64: 2, 1, 2, 256>}, {transform_indices = @transform_1, window_bounds = array<i64: 2, 2, 256>}]} {
    %c0 = arith.constant 0 : index
    %c0_0 = arith.constant 0 : index
    %c0_1 = arith.constant 0 : index
    %c0_2 = arith.constant 0 : index
    %0 = vector.load %arg2[%c0, %c0_0, %c0_1, %c0_2] : memref<2x1x2x256xf32, #tpu.memory_space<vmem>>, vector<2x1x2x256xf32>
    %1 = vector.shape_cast %0 : vector<2x1x2x256xf32> to vector<2x2x256xf32>
    %c0_3 = arith.constant 0 : index
    %c0_4 = arith.constant 0 : index
    %c0_5 = arith.constant 0 : index
    %2 = vector.load %arg3[%c0_3, %c0_4, %c0_5] : memref<2x2x256xf32, #tpu.memory_space<vmem>>, vector<2x2x256xf32>
    tpu.vector_store %arg3[%c0_3, %c0_4, %c0_5], %1 {strides = array<i32>} : memref<2x2x256xf32, #tpu.memory_space<vmem>>, vector<2x2x256xf32>,
    return
  }
  func.func @transform_0(%arg0: i32, %arg1: i32) -> (i32, i32, i32, i32) {
    %c0_i32 = arith.constant 0 : i32
    %c0_i32_0 = arith.constant 0 : i32
    %c0_i32_1 = arith.constant 0 : i32
    return %arg0, %arg1, %c0_i32, %c0_i32_0 : i32, i32, i32, i32
  }
  func.func @transform_1(%arg0: i32, %arg1: i32) -> (i32, i32, i32) {
    %c0_i32 = arith.constant 0 : i32
    %c0_i32_0 = arith.constant 0 : i32
    return %arg0, %c0_i32, %arg1 : i32, i32, i32
  }
}

</mosaic_0001>

<llo_original>
// kernel: tpu_custom_call.1
$region0: #{tpu_custom_call.1}
  #allocation0 [shape = 'u32[]', space=smem, size = 0x4, offset = 0x4, fixed_abs, tag = 'smem constant byte address 0x4 - core index']
  #allocation1 [shape = 'u32[144,128]{1,0:T(1,128)}', space=vmem, size = 0x12000, scoped, tag = 'internal scratch']
  %s0 = inlined_call_operand.hbm [shape: f32[2,2,2,256], index: 0, kind: input, shape index: {}]
  %s1 = inlined_call_operand.hbm [shape: f32[2,2,512], index: 1, kind: output, shape index: {}]
  %s2 = sld [smem:[#allocation0]]
  $region41: #{tpu_custom_call.1} parent=0
    _
  %s4 = ssub.s32 1, %s2
  %s5 = scalar_select 0, %s4, %s2
  $region1: #{tpu_custom_call.1} parent=0
    #allocation2 [shape = 'u8[8192]{0}', space=vmem, size = 0x2000, scoped, tag = 'input window, operand 0']
    #allocation3 [shape = 's32[2]{0}', space=sflag, size = 0x8, scoped, tag = 'scoped memory for tpu_custom_call.1']
    #allocation4 [shape = 's32[2]{0}', space=sflag, size = 0x8, scoped, tag = 'scoped memory for tpu_custom_call.1']
    #allocation5 [shape = 'u8[8192]{0}', space=vmem, size = 0x2000, scoped, tag = 'output window, operand 0']
    %6 = vsyncpa [#allocation3], 0
    %s7 = scalar_lea.sflag [#allocation3], 1
    %8 = vsyncpa %s7, 0
    %9 = vsyncpa [#allocation4], 0
    %s10 = scalar_lea.sflag [#allocation4], 1
    %11 = vsyncpa %s10, 0
    loop: start=0, step=1, limit=4
    $region2: #{tpu_custom_call.1} parent=1 // loop_pre_header
      _
    $region3: #{tpu_custom_call.1} parent=1 // loop_header
      %s13 = sphi 0, %s17
      %p14 = scmp.ge.s32.totalorder %s13, 4
      %s20 = sphi 0, %s32
      %s21 = sphi 0, %s28
      %s22 = sphi 0, %s20
      %s23 = sphi 0, %s21
      %s24 = sphi 0, %s22
      %s25 = sphi 0, %s23
      %s37 = sphi 0, %s39
      %s40 = sphi 0, %s37
      %s41 = sphi 0, %s40
      %s57 = sphi 0, %s41
      %s65 = sphi 0, %s67
      %s68 = sphi 0, %s65
      %s69 = sphi 0, %s68
      %s85 = sphi 0, %s69
    $region4: #{tpu_custom_call.1} parent=1 // loop_header_branch
      %16 = sbr.rel (%p14) target = $region8
    $region5: #{tpu_custom_call.1} parent=1 // loop_body
      %s18 = ssub.s32 %s13, 1
      %s19 = ssub.s32 %s13, 2
      %s26 = sadd.s32 1, %s21
      %p27 = scmp.ge.s32.totalorder %s26, 2
      %s28 = scalar_select %p27, 0, %s26
      %s29 = sadd.s32 1, %s20
      %s30 = scalar_select %p27, %s29, %s20
      %p31 = scmp.ge.s32.totalorder %s30, 1
      %s32 = scalar_select %p31, 0, %s30
      %s33 = ssub.s32 %s20, %s32
      %s34 = ssub.s32 %s21, %s28
      %s35 = sor.u32 %s33, %s34
      %p36 = scmp.eq.s32.totalorder %s35, 0
      %s38 = sadd.s32 %s37, 1
      %s39 = scalar_select %p36, %s37, %s38
      %p42 = pneg %p36
      %p43 = scmp.eq.s32.totalorder %s13, 1
      %p44 = por %p42, %p43
      %p45 = scmp.ne.s32.totalorder %s37, %s40
      %p46 = scmp.eq.s32.totalorder %s13, 0
      %p47 = por %p45, %p46
      %p48 = scmp.ne.s32.totalorder %s37, %s40
      %p49 = scmp.eq.s32.totalorder %s18, 1
      %p50 = por %p48, %p49
      %p51 = scmp.ne.s32.totalorder %s40, %s41
      %p52 = scmp.eq.s32.totalorder %s18, 0
      %p53 = por %p51, %p52
      %p54 = scmp.ne.s32.totalorder %s40, %s41
      %p55 = scmp.eq.s32.totalorder %s19, 1
      %p56 = por %p54, %p55
      %p58 = scmp.ne.s32.totalorder %s41, %s57
      %p59 = scmp.eq.s32.totalorder %s19, 0
      %p60 = por %p58, %p59
      %s61 = ssub.s32 %s20, %s32
      %s62 = ssub.s32 %s21, %s28
      %s63 = sor.u32 %s61, %s62
      %p64 = scmp.eq.s32.totalorder %s63, 0
      %s66 = sadd.s32 %s65, 1
      %s67 = scalar_select %p64, %s65, %s66
      %p70 = pneg %p64
      %p71 = scmp.eq.s32.totalorder %s13, 1
      %p72 = por %p70, %p71
      %p73 = scmp.ne.s32.totalorder %s65, %s68
      %p74 = scmp.eq.s32.totalorder %s13, 0
      %p75 = por %p73, %p74
      %p76 = scmp.ne.s32.totalorder %s65, %s68
      %p77 = scmp.eq.s32.totalorder %s18, 1
      %p78 = por %p76, %p77
      %p79 = scmp.ne.s32.totalorder %s68, %s69
      %p80 = scmp.eq.s32.totalorder %s18, 0
      %p81 = por %p79, %p80
      %p82 = scmp.ne.s32.totalorder %s68, %s69
      %p83 = scmp.eq.s32.totalorder %s19, 1
      %p84 = por %p82, %p83
      %p86 = scmp.ne.s32.totalorder %s69, %s85
      %p87 = scmp.eq.s32.totalorder %s19, 0
      %p88 = por %p86, %p87
      %p89 = scmp.le.s32.totalorder 1, %s13
      %p90 = scmp.lt.s32.totalorder %s13, 3
      %p91 = pnand %p89, %p90
      %p92 = pneg %p91
      // Predicated region
      $region9: #{tpu_custom_call.1} parent=5 // pred_check
        _
      $region10: #{tpu_custom_call.1} parent=5 // pred_check_branch
        %94 = sbr.rel (%p91) target = $region12
      $region11: #{tpu_custom_call.1} parent=5 // pred_region
        %s95 = ssub.s32 %s13, 1
      $region12: #{tpu_custom_call.1} parent=5 // pred_fallthru
        _
      %p96 = scmp.lt.s32.totalorder %s13, 2
      // Predicated region
      $region13: #{tpu_custom_call.1} parent=5 // pred_check
        %p97 = pneg %p96
      $region14: #{tpu_custom_call.1} parent=5 // pred_check_branch
        %99 = sbr.rel (%p97) target = $region16
      $region15: #{tpu_custom_call.1} parent=5 // pred_region
        // Predicated region
        $region17: #{tpu_custom_call.1} parent=15 // pred_check
          %p100 = pneg %p47
        $region18: #{tpu_custom_call.1} parent=15 // pred_check_branch
          %102 = sbr.rel (%p100) target = $region20
        $region19: #{tpu_custom_call.1} parent=15 // pred_region
          %s103 = sand.u32 %s37, 1
          %s104 = scalar_lea.sflag [#allocation3], %s103
          %s105 = sand.u32 %s37, 1
          %s106 = smul.addr %s105, 8
          %s107 = scalar_lea.vmem [#allocation2], %s106
          %s108 = smul.u32 2, %s20
          %s110 = ssub.s32 128, 128
          %111 = vsyncadd %s104, %s110
          %s112 = smul.addr %s21, 2
          %s113 = smul.addr %s108, 4
          %s114 = sadd.s32 %s112, %s113
          %s115 = smul.addr %s114, 32
          %s116 = scalar_lea.hbm %s0, %s115
          %s117 = sshll.u32 %s107, 4
          %s118 = int_to_ptr.vmem [resolvable:$true] %s117
          %123 = dma.hbm_to_vmem [thread:$0]  %s116, 128, %s118, %s104, 128, 64, 4
        $region20: #{tpu_custom_call.1} parent=15 // pred_fallthru
          _
      $region16: #{tpu_custom_call.1} parent=5 // pred_fallthru
        _
      %p124 = scmp.le.s32.totalorder 1, %s13
      %p125 = scmp.lt.s32.totalorder %s13, 3
      %p126 = pnand %p124, %p125
      %p127 = pneg %p126
      // Predicated region
      $region21: #{tpu_custom_call.1} parent=5 // pred_check
        _
      $region22: #{tpu_custom_call.1} parent=5 // pred_check_branch
        %129 = sbr.rel (%p126) target = $region24
      $region23: #{tpu_custom_call.1} parent=5 // pred_region
        %s130 = ssub.s32 %s13, 1
        %s131 = sand.u32 %s40, 1
        %s132 = scalar_lea.sflag [#allocation3], %s131
        %s133 = sand.u32 %s40, 1
        %s134 = smul.addr %s133, 8
        %s135 = scalar_lea.vmem [#allocation2], %s134
        // Predicated region
        $region25: #{tpu_custom_call.1} parent=23 // pred_check
          %p136 = pneg %p53
        $region26: #{tpu_custom_call.1} parent=23 // pred_check_branch
          %138 = sbr.rel (%p136) target = $region28
        $region27: #{tpu_custom_call.1} parent=23 // pred_region
          %139 = dma.done %s132, 128
        $region28: #{tpu_custom_call.1} parent=23 // pred_fallthru
          _
        %s140 = sand.u32 %s40, 1
        %s141 = scalar_lea.sflag [#allocation3], %s140
        %s142 = sand.u32 %s40, 1
        %s143 = smul.addr %s142, 8
        %s144 = scalar_lea.vmem [#allocation2], %s143
        %p145 = pneg %p53
        %p146 = pneg %p50
        %p147 = pneg %p81
        %p148 = pneg %p78
        %s149 = sand.u32 %s68, 1
        %s150 = scalar_lea.sflag [#allocation4], %s149
        %s151 = sand.u32 %s68, 1
        %s152 = smul.addr %s151, 8
        %s153 = scalar_lea.vmem [#allocation5], %s152
        %s154 = smul.u32 2, %s22
        %s155 = smul.u32 2, %s22
        %s156 = smul.u32 2, %s23
        %v157 = vld [vmem:[%s135] sm:$0xf]
        %v158 = vld [vmem:[%s135 + $0x4] sm:$0xf]
        %159 = vst [vmem:[%s153] sm:$0xf] %v157
        %160 = vst [vmem:[%s153 + $0x4] sm:$0xf] %v158
        %s161 = sand.u32 %s68, 1
        %s162 = scalar_lea.sflag [#allocation4], %s161
        %s163 = sand.u32 %s68, 1
        %s164 = smul.addr %s163, 8
        %s165 = scalar_lea.vmem [#allocation5], %s164
        // Predicated region
        $region29: #{tpu_custom_call.1} parent=23 // pred_check
          %p166 = pneg %p78
        $region30: #{tpu_custom_call.1} parent=23 // pred_check_branch
          %168 = sbr.rel (%p166) target = $region32
        $region31: #{tpu_custom_call.1} parent=23 // pred_region
          %s169 = smul.u32 2, %s22
          %s170 = smul.u32 2, %s23
          %s172 = ssub.s32 128, 128
          %173 = vsyncadd %s162, %s172
          %s174 = smul.addr %s169, 4
          %s175 = sadd.s32 %s170, %s174
          %s176 = smul.addr %s175, 32
          %s177 = scalar_lea.hbm %s1, %s176
          %s178 = sshll.u32 %s165, 4
          %s179 = int_to_ptr.vmem [resolvable:$true] %s178
          %184 = dma.vmem_to_hbm [thread:$0]  %s179, 128, %s177, %s162, 64, 128, 4
        $region32: #{tpu_custom_call.1} parent=23 // pred_fallthru
          _
      $region24: #{tpu_custom_call.1} parent=5 // pred_fallthru
        _
      %p185 = scmp.le.s32.totalorder 2, %s13
      // Predicated region
      $region33: #{tpu_custom_call.1} parent=5 // pred_check
        %p186 = pneg %p185
      $region34: #{tpu_custom_call.1} parent=5 // pred_check_branch
        %188 = sbr.rel (%p186) target = $region36
      $region35: #{tpu_custom_call.1} parent=5 // pred_region
        %s189 = ssub.s32 %s13, 2
        // Predicated region
        $region37: #{tpu_custom_call.1} parent=35 // pred_check
          %p190 = pneg %p84
        $region38: #{tpu_custom_call.1} parent=35 // pred_check_branch
          %192 = sbr.rel (%p190) target = $region40
        $region39: #{tpu_custom_call.1} parent=35 // pred_region
          %s193 = sand.u32 %s69, 1
          %s194 = scalar_lea.sflag [#allocation4], %s193
          %s195 = sand.u32 %s69, 1
          %s196 = smul.addr %s195, 8
          %s197 = scalar_lea.vmem [#allocation5], %s196
          %198 = dma.done %s194, 128
        $region40: #{tpu_custom_call.1} parent=35 // pred_fallthru
          _
      $region36: #{tpu_custom_call.1} parent=5 // pred_fallthru
        _
    $region6: #{tpu_custom_call.1} parent=1 // loop_footer
      %s17 = sadd.s32 1, %s13
    $region7: #{tpu_custom_call.1} parent=1 // loop_footer_branch
      %12 = sbr.rel target = $region3
    $region8: #{tpu_custom_call.1} parent=1 // loop_exit
      _
    %199 = vsyncpa [#allocation3], 1
    %s200 = scalar_lea.sflag [#allocation3], 1
    %201 = vsyncpa %s200, 1
    %202 = vsyncpa [#allocation4], 1
    %s203 = scalar_lea.sflag [#allocation4], 1
    %204 = vsyncpa %s203, 1

</llo_original>
